<compile_context>
chip_gen: v5e
topology: v5e:2x2
jax: 0.10.0
libtpu: 0.0.40
codegen_flags: <defaults>
</compile_context>

<pallas_src>
import jax
import jax.numpy as jnp
from jax.experimental import pallas as pl
from jax.experimental.pallas import tpu as pltpu

DEFAULT_MAX_TILE_B = 4096  # lanes per tile; sweep 2048-8192 if desired


def _round_up(n, m):
    return ((n + m - 1) // m) * m


def mlp_kernel(x_ref,
               w1_ref, b1_ref,
               w2_ref, b2_ref,
               w3_ref, b3_ref,
               w4_ref, b4_ref,
               o_ref):
    # Feature-major tile: x (2, TB), activations (feat, TB), output (3, TB).
    x = x_ref[...]                                  # (2, TB) f32
    w1 = w1_ref[...]                                # (16, 2) f32

    # Layer 1 (in=2): two broadcast FMAs on the VPU -- a K=2 MXU matmul would
    # be ~1-2% MXU utilization plus a push/pop round trip.
    h1 = jnp.maximum(w1[:, 0:1] * x[0:1, :]
                     + w1[:, 1:2] * x[1:2, :]
                     + b1_ref[...], 0.0)            # (16, TB) f32

    # Layers 2-4: lane-dense MXU matmuls (N = TB lanes), f32 accumulation.
    # Operands cast to the weight dtype (bf16 by default); bias/ReLU stay f32.
    cdt = w2_ref.dtype
    h2 = jnp.dot(w2_ref[...], h1.astype(cdt),
                 preferred_element_type=jnp.float32) + b2_ref[...]   # (32, TB)
    h2 = jnp.maximum(h2, 0.0)

    h3 = jnp.dot(w3_ref[...], h2.astype(cdt),
                 preferred_element_type=jnp.float32) + b3_ref[...]   # (16, TB)
    h3 = jnp.maximum(h3, 0.0)

    h4 = jnp.dot(w4_ref[...], h3.astype(cdt),
                 preferred_element_type=jnp.float32) + b4_ref[...]   # (3, TB)

    o_ref[...] = h4.astype(o_ref.dtype)


def height_weight_bmi_forward(x, params, *, tile_b=None,
                              max_tile_b=DEFAULT_MAX_TILE_B,
                              matmul_dtype=jnp.bfloat16):
    """x: (B, 2). params: w{i} in PyTorch (out, in) layout, b{i} as (out,)."""
    B = x.shape[0]
    if tile_b is None:
        # Large tiles so per-grid-step overhead (~0.35 us) is amortized; capped
        # so huge batches still split into multiple (parallel) grid steps.
        tile_b = min(_round_up(max(B, 1), 128), max_tile_b)
    num_tiles = pl.cdiv(B, tile_b)
    b_pad = num_tiles * tile_b

    # Feature-major input (lane axis = batch). Pad only when needed; padded
    # columns are computed and sliced off, never contaminating real rows.
    xt = x.astype(jnp.float32).T                    # (2, B)
    if b_pad != B:
        xt = jnp.pad(xt, ((0, 0), (0, b_pad - B)))
    # TODO(synk): to shave the remaining wrapper traffic, DMA the natural
    # (B, 2) layout with a (tile_b, 2) block and transpose in-kernel (XLU),
    # and/or hand the feature-major (3, B) result directly to the consumer.

    cdt = jnp.dtype(matmul_dtype)
    f32 = jnp.float32
    w1 = params["w1"].astype(f32)        # (16, 2)  layer 1 runs on the VPU in f32
    w2 = params["w2"].astype(cdt)        # (32, 16)
    w3 = params["w3"].astype(cdt)        # (16, 32)
    w4 = params["w4"].astype(cdt)        # (3, 16)
    b1 = params["b1"].astype(f32).reshape(-1, 1)
    b2 = params["b2"].astype(f32).reshape(-1, 1)
    b3 = params["b3"].astype(f32).reshape(-1, 1)
    b4 = params["b4"].astype(f32).reshape(-1, 1)
    weights = [w1, b1, w2, b2, w3, b3, w4, b4]

    def resident(arr):
        # Constant index_map -> parameter stays resident in VMEM, DMA'd once.
        return pl.BlockSpec(arr.shape, lambda i: (0, 0))

    param_bytes = sum(int(w.size) * w.dtype.itemsize for w in weights)
    flops = 2 * b_pad * (2 * 16 + 16 * 32 + 32 * 16 + 16 * 3)
    bytes_accessed = b_pad * (2 + 3) * 4 + param_bytes

    out_t = pl.pallas_call(
        mlp_kernel,
        out_shape=jax.ShapeDtypeStruct((3, b_pad), jnp.float32),
        grid=(num_tiles,),
        in_specs=[pl.BlockSpec((2, tile_b), lambda i: (0, i))]
                 + [resident(w) for w in weights],
        out_specs=pl.BlockSpec((3, tile_b), lambda i: (0, i)),
        compiler_params=pltpu.CompilerParams(
            dimension_semantics=("parallel",)),
        cost_estimate=pl.CostEstimate(flops=flops,
                                      transcendentals=0,
                                      bytes_accessed=bytes_accessed),
    )(xt, *weights)

    # Restore PyTorch's (B, 3) layout and drop padded columns. The kernel
    # output itself stays lane-dense (3, tile_b); do not regress the out_spec
    # to (tile_b, 3) blocks (masked vst.msk partial stores).
    return out_t[:, :B].T


def init_params(key):
    """PyTorch-layout params: Linear(in,out) -> weight (out,in), bias (out,).
    Uniform(-1/sqrt(in), 1/sqrt(in)) like torch's default init."""
    dims = [(2, 16), (16, 32), (32, 16), (16, 3)]
    params = {}
    for i, (fan_in, fan_out) in enumerate(dims, start=1):
        key, kw, kb = jax.random.split(key, 3)
        bound = 1.0 / (fan_in ** 0.5)
        params[f"w{i}"] = jax.random.uniform(
            kw, (fan_out, fan_in), jnp.float32, -bound, bound)
        params[f"b{i}"] = jax.random.uniform(
            kb, (fan_out,), jnp.float32, -bound, bound)
    return params


def reference_forward(x, params):
    h = x
    for i, act in ((1, True), (2, True), (3, True), (4, False)):
        h = jnp.dot(h, params[f"w{i}"].T, precision="highest") + params[f"b{i}"]
        if act:
            h = jnp.maximum(h, 0.0)
    return h


if __name__ == "__main__":
    key = jax.random.PRNGKey(0)
    key, kx = jax.random.split(key)
    params = init_params(key)

    # Small deterministic example: batch=8, features=(height, weight).
    B = 8
    x = jax.random.uniform(kx, (B, 2), jnp.float32, 0.0, 2.0)
    ref = reference_forward(x, params)

    # Default path (bf16 MXU operands, f32 accumulation / elementwise).
    out = jax.block_until_ready(height_weight_bmi_forward(x, params))
    assert out.shape == (B, 3)
    assert jnp.allclose(out, ref, atol=5e-2, rtol=5e-2), "bf16 path mismatch vs reference"

    # Full-f32 path, tight tolerance.
    out_f32 = jax.block_until_ready(
        height_weight_bmi_forward(x, params, matmul_dtype=jnp.float32))
    assert jnp.allclose(out_f32, ref, atol=1e-5, rtol=1e-5), "f32 path mismatch vs reference"

    # Multi-tile + ragged-batch path (2 grid steps, padded tail tile), f32.
    key, kx2 = jax.random.split(key)
    B2 = 200
    x2 = jax.random.uniform(kx2, (B2, 2), jnp.float32, 0.0, 2.0)
    ref2 = reference_forward(x2, params)
    out2 = jax.block_until_ready(
        height_weight_bmi_forward(x2, params, tile_b=128, matmul_dtype=jnp.float32))
    assert out2.shape == (B2, 3)
    assert jnp.allclose(out2, ref2, atol=1e-5, rtol=1e-5), "multi-tile path mismatch"

    print("KERNEL_OK")
</pallas_src>

<mosaic_0001>
module attributes {stable_mosaic.version = 11 : i64} {
  func.func @mlp_kernel(%arg0: i32, %arg1: memref<2x128xf32, #tpu.memory_space<vmem>>, %arg2: memref<16x2xf32, #tpu.memory_space<vmem>>, %arg3: memref<16x1xf32, #tpu.memory_space<vmem>>, %arg4: memref<32x16xbf16, #tpu.memory_space<vmem>>, %arg5: memref<32x1xf32, #tpu.memory_space<vmem>>, %arg6: memref<16x32xbf16, #tpu.memory_space<vmem>>, %arg7: memref<16x1xf32, #tpu.memory_space<vmem>>, %arg8: memref<3x16xbf16, #tpu.memory_space<vmem>>, %arg9: memref<3x1xf32, #tpu.memory_space<vmem>>, %arg10: memref<3x128xf32, #tpu.memory_space<vmem>>) attributes {dimension_semantics = [#tpu.dimension_semantics<parallel>], iteration_bounds = array<i64: 1>, scalar_prefetch = 0 : i64, scratch_operands = 0 : i64, tpu.core_type = #tpu.core_type<tc>, window_params = [{transform_indices = @transform_0, window_bounds = array<i64: 2, 128>}, {pipeline_mode = #tpu.pipeline_mode<synchronous>, transform_indices = @transform_1, window_bounds = array<i64: 16, 2>}, {pipeline_mode = #tpu.pipeline_mode<synchronous>, transform_indices = @transform_2, window_bounds = array<i64: 16, 1>}, {pipeline_mode = #tpu.pipeline_mode<synchronous>, transform_indices = @transform_3, window_bounds = array<i64: 32, 16>}, {pipeline_mode = #tpu.pipeline_mode<synchronous>, transform_indices = @transform_4, window_bounds = array<i64: 32, 1>}, {pipeline_mode = #tpu.pipeline_mode<synchronous>, transform_indices = @transform_5, window_bounds = array<i64: 16, 32>}, {pipeline_mode = #tpu.pipeline_mode<synchronous>, transform_indices = @transform_6, window_bounds = array<i64: 16, 1>}, {pipeline_mode = #tpu.pipeline_mode<synchronous>, transform_indices = @transform_7, window_bounds = array<i64: 3, 16>}, {pipeline_mode = #tpu.pipeline_mode<synchronous>, transform_indices = @transform_8, window_bounds = array<i64: 3, 1>}, {transform_indices = @transform_9, window_bounds = array<i64: 3, 128>}]} {
    %c0 = arith.constant 0 : index
    %c0_0 = arith.constant 0 : index
    %0 = vector.load %arg1[%c0, %c0_0] : memref<2x128xf32, #tpu.memory_space<vmem>>, vector<2x128xf32>
    %c0_1 = arith.constant 0 : index
    %c0_2 = arith.constant 0 : index
    %1 = vector.load %arg2[%c0_1, %c0_2] : memref<16x2xf32, #tpu.memory_space<vmem>>, vector<16x2xf32>
    %2 = vector.extract_strided_slice %1 {offsets = [0, 0], sizes = [16, 1], strides = [1, 1]} : vector<16x2xf32> to vector<16x1xf32>
    %3 = vector.extract_strided_slice %0 {offsets = [0, 0], sizes = [1, 128], strides = [1, 1]} : vector<2x128xf32> to vector<1x128xf32>
    %4 = vector.broadcast %2 : vector<16x1xf32> to vector<16x128xf32>
    %5 = vector.broadcast %3 : vector<1x128xf32> to vector<16x128xf32>
    %6 = arith.mulf %4, %5 : vector<16x128xf32>
    %7 = vector.extract_strided_slice %1 {offsets = [0, 1], sizes = [16, 1], strides = [1, 1]} : vector<16x2xf32> to vector<16x1xf32>
    %8 = vector.extract_strided_slice %0 {offsets = [1, 0], sizes = [1, 128], strides = [1, 1]} : vector<2x128xf32> to vector<1x128xf32>
    %9 = vector.broadcast %7 : vector<16x1xf32> to vector<16x128xf32>
    %10 = vector.broadcast %8 : vector<1x128xf32> to vector<16x128xf32>
    %11 = arith.mulf %9, %10 : vector<16x128xf32>
    %12 = arith.addf %6, %11 : vector<16x128xf32>
    %c0_3 = arith.constant 0 : index
    %c0_4 = arith.constant 0 : index
    %13 = vector.load %arg3[%c0_3, %c0_4] : memref<16x1xf32, #tpu.memory_space<vmem>>, vector<16x1xf32>
    %14 = vector.broadcast %13 : vector<16x1xf32> to vector<16x128xf32>
    %15 = arith.addf %12, %14 : vector<16x128xf32>
    %cst = arith.constant 0.000000e+00 : f32
    %16 = vector.broadcast %cst : f32 to vector<16x128xf32>
    %17 = arith.maximumf %15, %16 : vector<16x128xf32>
    %c0_5 = arith.constant 0 : index
    %c0_6 = arith.constant 0 : index
    %18 = vector.load %arg4[%c0_5, %c0_6] : memref<32x16xbf16, #tpu.memory_space<vmem>>, vector<32x16xbf16>
    %19 = arith.truncf %17 : vector<16x128xf32> to vector<16x128xbf16>
    %cst_7 = arith.constant dense<0.000000e+00> : vector<32x128xf32>
    %20 = tpu.matmul %18, %19, %cst_7 {dimension_numbers = #tpu.dot_dimension_numbers<[1], [0], [0], [1], [0, 0, 1, 1], [], []>} : vector<32x16xbf16>, vector<16x128xbf16>, vector<32x128xf32> -> vector<32x128xf32>
    %c0_8 = arith.constant 0 : index
    %c0_9 = arith.constant 0 : index
    %21 = vector.load %arg5[%c0_8, %c0_9] : memref<32x1xf32, #tpu.memory_space<vmem>>, vector<32x1xf32>
    %22 = vector.broadcast %21 : vector<32x1xf32> to vector<32x128xf32>
    %23 = arith.addf %20, %22 : vector<32x128xf32>
    %cst_10 = arith.constant 0.000000e+00 : f32
    %24 = vector.broadcast %cst_10 : f32 to vector<32x128xf32>
    %25 = arith.maximumf %23, %24 : vector<32x128xf32>
    %c0_11 = arith.constant 0 : index
    %c0_12 = arith.constant 0 : index
    %26 = vector.load %arg6[%c0_11, %c0_12] : memref<16x32xbf16, #tpu.memory_space<vmem>>, vector<16x32xbf16>
    %27 = arith.truncf %25 : vector<32x128xf32> to vector<32x128xbf16>
    %cst_13 = arith.constant dense<0.000000e+00> : vector<16x128xf32>
    %28 = tpu.matmul %26, %27, %cst_13 {dimension_numbers = #tpu.dot_dimension_numbers<[1], [0], [0], [1], [0, 0, 1, 1], [], []>} : vector<16x32xbf16>, vector<32x128xbf16>, vector<16x128xf32> -> vector<16x128xf32>
    %c0_14 = arith.constant 0 : index
    %c0_15 = arith.constant 0 : index
    %29 = vector.load %arg7[%c0_14, %c0_15] : memref<16x1xf32, #tpu.memory_space<vmem>>, vector<16x1xf32>
    %30 = vector.broadcast %29 : vector<16x1xf32> to vector<16x128xf32>
    %31 = arith.addf %28, %30 : vector<16x128xf32>
    %cst_16 = arith.constant 0.000000e+00 : f32
    %32 = vector.broadcast %cst_16 : f32 to vector<16x128xf32>
    %33 = arith.maximumf %31, %32 : vector<16x128xf32>
    %c0_17 = arith.constant 0 : index
    %c0_18 = arith.constant 0 : index
    %34 = vector.load %arg8[%c0_17, %c0_18] : memref<3x16xbf16, #tpu.memory_space<vmem>>, vector<3x16xbf16>
    %35 = arith.truncf %33 : vector<16x128xf32> to vector<16x128xbf16>
    %cst_19 = arith.constant dense<0.000000e+00> : vector<3x128xf32>
    %36 = tpu.matmul %34, %35, %cst_19 {dimension_numbers = #tpu.dot_dimension_numbers<[1], [0], [0], [1], [0, 0, 1, 1], [], []>} : vector<3x16xbf16>, vector<16x128xbf16>, vector<3x128xf32> -> vector<3x128xf32>
    %c0_20 = arith.constant 0 : index
    %c0_21 = arith.constant 0 : index
    %37 = vector.load %arg9[%c0_20, %c0_21] : memref<3x1xf32, #tpu.memory_space<vmem>>, vector<3x1xf32>
    %38 = vector.broadcast %37 : vector<3x1xf32> to vector<3x128xf32>
    %39 = arith.addf %36, %38 : vector<3x128xf32>
    %c0_22 = arith.constant 0 : index
    %c0_23 = arith.constant 0 : index
    %40 = vector.load %arg10[%c0_22, %c0_23] : memref<3x128xf32, #tpu.memory_space<vmem>>, vector<3x128xf32>
    tpu.vector_store %arg10[%c0_22, %c0_23], %39 {strides = array<i32>} : memref<3x128xf32, #tpu.memory_space<vmem>>, vector<3x128xf32>,
    return
  }
  func.func @transform_0(%arg0: i32) -> (i32, i32) {
    %c0_i32 = arith.constant 0 : i32
    %c0_i32_0 = arith.constant 0 : i32
    return %c0_i32, %arg0 : i32, i32
  }
  func.func @transform_1(%arg0: i32) -> (i32, i32) {
    %c0_i32 = arith.constant 0 : i32
    %c0_i32_0 = arith.constant 0 : i32
    %c0_i32_1 = arith.constant 0 : i32
    return %c0_i32, %c0_i32_0 : i32, i32
  }
  func.func @transform_2(%arg0: i32) -> (i32, i32) {
    %c0_i32 = arith.constant 0 : i32
    %c0_i32_0 = arith.constant 0 : i32
    %c0_i32_1 = arith.constant 0 : i32
    return %c0_i32, %c0_i32_0 : i32, i32
  }
  func.func @transform_3(%arg0: i32) -> (i32, i32) {
    %c0_i32 = arith.constant 0 : i32
    %c0_i32_0 = arith.constant 0 : i32
    %c0_i32_1 = arith.constant 0 : i32
    return %c0_i32, %c0_i32_0 : i32, i32
  }
  func.func @transform_4(%arg0: i32) -> (i32, i32) {
    %c0_i32 = arith.constant 0 : i32
    %c0_i32_0 = arith.constant 0 : i32
    %c0_i32_1 = arith.constant 0 : i32
    return %c0_i32, %c0_i32_0 : i32, i32
  }
  func.func @transform_5(%arg0: i32) -> (i32, i32) {
    %c0_i32 = arith.constant 0 : i32
    %c0_i32_0 = arith.constant 0 : i32
    %c0_i32_1 = arith.constant 0 : i32
    return %c0_i32, %c0_i32_0 : i32, i32
  }
  func.func @transform_6(%arg0: i32) -> (i32, i32) {
    %c0_i32 = arith.constant 0 : i32
    %c0_i32_0 = arith.constant 0 : i32
    %c0_i32_1 = arith.constant 0 : i32
    return %c0_i32, %c0_i32_0 : i32, i32
  }
  func.func @transform_7(%arg0: i32) -> (i32, i32) {
    %c0_i32 = arith.constant 0 : i32
    %c0_i32_0 = arith.constant 0 : i32
    %c0_i32_1 = arith.constant 0 : i32
    return %c0_i32, %c0_i32_0 : i32, i32
  }
  func.func @transform_8(%arg0: i32) -> (i32, i32) {
    %c0_i32 = arith.constant 0 : i32
    %c0_i32_0 = arith.constant 0 : i32
    %c0_i32_1 = arith.constant 0 : i32
    return %c0_i32, %c0_i32_0 : i32, i32
  }
  func.func @transform_9(%arg0: i32) -> (i32, i32) {
    %c0_i32 = arith.constant 0 : i32
    %c0_i32_0 = arith.constant 0 : i32
    return %c0_i32, %arg0 : i32, i32
  }
}

</mosaic_0001>

<llo_original>
// kernel: tpu_custom_call.1
$region0: #{tpu_custom_call.1}
  #allocation0 [shape = 'u32[]', space=smem, size = 0x4, offset = 0x4, fixed_abs, tag = 'smem constant byte address 0x4 - core index']
  #allocation1 [shape = 'u32[72,128]{1,0:T(1,128)}', space=vmem, size = 0x9000, scoped, tag = 'internal scratch']
  %s0 = inlined_call_operand.vmem [shape: f32[2,128], index: 0, kind: input, shape index: {}]
  %s1 = inlined_call_operand.vmem [shape: f32[16,2], index: 1, kind: input, shape index: {}]
  %s2 = inlined_call_operand.vmem [shape: f32[16,1], index: 2, kind: input, shape index: {}]
  %s3 = inlined_call_operand.vmem [shape: bf16[32,16], index: 3, kind: input, shape index: {}]
  %s4 = inlined_call_operand.vmem [shape: f32[32,1], index: 4, kind: input, shape index: {}]
  %s5 = inlined_call_operand.vmem [shape: bf16[16,32], index: 5, kind: input, shape index: {}]
  %s6 = inlined_call_operand.vmem [shape: f32[16,1], index: 6, kind: input, shape index: {}]
  %s7 = inlined_call_operand.vmem [shape: bf16[3,16], index: 7, kind: input, shape index: {}]
  %s8 = inlined_call_operand.vmem [shape: f32[3,1], index: 8, kind: input, shape index: {}]
  %s9 = inlined_call_operand.hbm [shape: f32[3,128], index: 9, kind: output, shape index: {}]
  %s10 = sld [smem:[#allocation0]]
  $region46: #{tpu_custom_call.1} parent=0
    _
  %s12 = ssub.s32 1, %s10
  %s13 = scalar_select 0, %s12, %s10
  $region1: #{tpu_custom_call.1} parent=0
    #allocation2 [shape = 'u8[2048]{0}', space=vmem, size = 0x800, scoped, tag = 'output window, operand 0, single buffered']
    #allocation3 [shape = 's32[1]{0}', space=sflag, size = 0x4, scoped, tag = 'scoped memory for tpu_custom_call.1']
    %14 = vsyncpa [#allocation3], 0
    // Predicated region
    $region2: #{tpu_custom_call.1} parent=1 // pred_check
      _
    $region3: #{tpu_custom_call.1} parent=1 // pred_check_branch
      %16 = sbr.rel (0) target = $region5
    $region4: #{tpu_custom_call.1} parent=1 // pred_region
      _
    $region5: #{tpu_custom_call.1} parent=1 // pred_fallthru
      _
    // Predicated region
    $region6: #{tpu_custom_call.1} parent=1 // pred_check
      _
    $region7: #{tpu_custom_call.1} parent=1 // pred_check_branch
      %18 = sbr.rel (0) target = $region9
    $region8: #{tpu_custom_call.1} parent=1 // pred_region
      _
    $region9: #{tpu_custom_call.1} parent=1 // pred_fallthru
      _
    // Predicated region
    $region10: #{tpu_custom_call.1} parent=1 // pred_check
      _
    $region11: #{tpu_custom_call.1} parent=1 // pred_check_branch
      %20 = sbr.rel (0) target = $region13
    $region12: #{tpu_custom_call.1} parent=1 // pred_region
      _
    $region13: #{tpu_custom_call.1} parent=1 // pred_fallthru
      _
    // Predicated region
    $region14: #{tpu_custom_call.1} parent=1 // pred_check
      _
    $region15: #{tpu_custom_call.1} parent=1 // pred_check_branch
      %22 = sbr.rel (0) target = $region17
    $region16: #{tpu_custom_call.1} parent=1 // pred_region
      _
    $region17: #{tpu_custom_call.1} parent=1 // pred_fallthru
      _
    // Predicated region
    $region18: #{tpu_custom_call.1} parent=1 // pred_check
      _
    $region19: #{tpu_custom_call.1} parent=1 // pred_check_branch
      %24 = sbr.rel (0) target = $region21
    $region20: #{tpu_custom_call.1} parent=1 // pred_region
      _
    $region21: #{tpu_custom_call.1} parent=1 // pred_fallthru
      _
    // Predicated region
    $region22: #{tpu_custom_call.1} parent=1 // pred_check
      _
    $region23: #{tpu_custom_call.1} parent=1 // pred_check_branch
      %26 = sbr.rel (0) target = $region25
    $region24: #{tpu_custom_call.1} parent=1 // pred_region
      _
    $region25: #{tpu_custom_call.1} parent=1 // pred_fallthru
      _
    // Predicated region
    $region26: #{tpu_custom_call.1} parent=1 // pred_check
      _
    $region27: #{tpu_custom_call.1} parent=1 // pred_check_branch
      %28 = sbr.rel (0) target = $region29
    $region28: #{tpu_custom_call.1} parent=1 // pred_region
      _
    $region29: #{tpu_custom_call.1} parent=1 // pred_fallthru
      _
    // Predicated region
    $region30: #{tpu_custom_call.1} parent=1 // pred_check
      _
    $region31: #{tpu_custom_call.1} parent=1 // pred_check_branch
      %30 = sbr.rel (0) target = $region33
    $region32: #{tpu_custom_call.1} parent=1 // pred_region
      _
    $region33: #{tpu_custom_call.1} parent=1 // pred_fallthru
      _
    // Predicated region
    $region34: #{tpu_custom_call.1} parent=1 // pred_check
      _
    $region35: #{tpu_custom_call.1} parent=1 // pred_check_branch
      %32 = sbr.rel (0) target = $region37
    $region36: #{tpu_custom_call.1} parent=1 // pred_region
      _
    $region37: #{tpu_custom_call.1} parent=1 // pred_fallthru
      _
    %v34 = vld [vmem:[%s0] sm:$0x3]
    %v35 = vld [vmem:[%s1] sm:$0xff]
    %v36 = vld [vmem:[%s1 + $0x8] sm:$0xff]
    %38 = vset.pattern.permute.xlu0 0
    %39 = vperm.xlu0 %38, %v35
    %v40 = vpop.permute.xlu0 %39
    %43 = vset.pattern.permute.xlu0 0
    %44 = vperm.xlu0 %43, %v36
    %v45 = vpop.permute.xlu0 %44
    %v47 = vperm.slane %v34, 0
    %v48 = vmul.f32 %v40, %v47
    %v49 = vmul.f32 %v45, %v47
    %50 = vset.pattern.permute.xlu0 1
    %51 = vperm.xlu0 %50, %v35
    %v52 = vpop.permute.xlu0 %51
    %54 = vset.pattern.permute.xlu0 1
    %55 = vperm.xlu0 %54, %v36
    %v56 = vpop.permute.xlu0 %55
    %v58 = vperm.slane %v34, 1
    %v59 = vmul.f32 %v52, %v58
    %v60 = vmul.f32 %v56, %v58
    %v61 = vadd.f32 %v48, %v59
    %v62 = vadd.f32 %v49, %v60
    %v63 = vld [vmem:[%s2] sm:$0xff]
    %v64 = vld [vmem:[%s2 + $0x8] sm:$0xff]
    %66 = vset.pattern.permute.xlu0 0
    %67 = vperm.xlu0 %66, %v63
    %v68 = vpop.permute.xlu0 %67
    %71 = vset.pattern.permute.xlu0 0
    %72 = vperm.xlu0 %71, %v64
    %v73 = vpop.permute.xlu0 %72
    %v75 = vadd.f32 %v61, %v68
    %v76 = vadd.f32 %v62, %v73
    %v77 = vmax.f32 %v75, 0.0
    %v78 = vmax.f32 %v76, 0.0
    %v79 = vld [vmem:[%s3] sm:$0xf]
    %v80 = vld [vmem:[%s3 + $0x4] sm:$0xf]
    %v81 = vld [vmem:[%s3 + $0x8] sm:$0xf]
    %v82 = vld [vmem:[%s3 + $0xc] sm:$0xf]
    %v83 = vpack.c.bf16 %v78, %v77
    %v84 = vld [vmem:[%s4] sm:$0xff]
    %v85 = vld [vmem:[%s4 + $0x8] sm:$0xff]
    %v86 = vld [vmem:[%s4 + $0x10] sm:$0xff]
    %v87 = vld [vmem:[%s4 + $0x18] sm:$0xff]
    %89 = vset.pattern.permute.xlu0 0
    %90 = vperm.xlu0 %89, %v84
    %v91 = vpop.permute.xlu0 %90
    %94 = vset.pattern.permute.xlu0 0
    %95 = vperm.xlu0 %94, %v85
    %v96 = vpop.permute.xlu0 %95
    %99 = vset.pattern.permute.xlu0 0
    %100 = vperm.xlu0 %99, %v86
    %v101 = vpop.permute.xlu0 %100
    %104 = vset.pattern.permute.xlu0 0
    %105 = vperm.xlu0 %104, %v87
    %v106 = vpop.permute.xlu0 %105
    %v112 = vunpack.c.l.b16 %v79
    %v113 = vunpack.c.l.b16 %v80
    %v114 = vunpack.c.l.b16 %v81
    %v115 = vunpack.c.l.b16 %v82
    %v116 = vpack.c.b16 %v113, %v112
    %v117 = vpack.c.b16 %v115, %v114
    %vm118 = vcmask 130048
    %v120 = vsel %vm118, %v116, 0
    %v123 = vsel %vm118, %v117, 0
    %125 = vmatpush.bf16.msra.mxu0 0
    %126 = vmatpush.bf16.msra.mxu0 0
    %127 = vmatpush.bf16.msra.mxu0 0
    %128 = vmatpush.bf16.msra.mxu0 0
    %129 = vmatpush.bf16.msra.mxu0 0
    %130 = vmatpush.bf16.msra.mxu0 0
    %131 = vmatpush.bf16.msra.mxu0 0
    %132 = vmatpush.bf16.msra.mxu0 %v83
    %133 = vmatmul.bf16.gmra.mxu0 %v120
    %v134 = vpop.f32.mrf.mxu0
    %v135 = vadd.f32 %v91, %v134
    %v136 = vpop.f32.mrf.mxu0
    %v137 = vadd.f32 %v96, %v136
    %138 = vmatmul.bf16.gmra.mxu0 %v123
    %v139 = vpop.f32.mrf.mxu0
    %v140 = vadd.f32 %v101, %v139
    %v141 = vpop.f32.mrf.mxu0
    %v142 = vadd.f32 %v106, %v141
    %143 = vdwg.mxu0
    %v144 = vmax.f32 %v135, 0.0
    %v145 = vmax.f32 %v137, 0.0
    %v146 = vmax.f32 %v140, 0.0
    %v147 = vmax.f32 %v142, 0.0
    %v148 = vld [vmem:[%s5] sm:$0xf]
    %v149 = vld [vmem:[%s5 + $0x4] sm:$0xf]
    %v150 = vpack.c.bf16 %v145, %v144
    %v151 = vpack.c.bf16 %v147, %v146
    %v152 = vld [vmem:[%s6] sm:$0xff]
    %v153 = vld [vmem:[%s6 + $0x8] sm:$0xff]
    %155 = vset.pattern.permute.xlu0 0
    %156 = vperm.xlu0 %155, %v152
    %v157 = vpop.permute.xlu0 %156
    %160 = vset.pattern.permute.xlu0 0
    %161 = vperm.xlu0 %160, %v153
    %v162 = vpop.permute.xlu0 %161
    %v166 = vunpack.c.l.b16 %v148
    %v167 = vunpack.c.l.b16 %v149
    %v168 = vpack.c.b16 %v167, %v166
    %vm169 = vcmask 261120
    %v171 = vsel %vm169, %v168, 0
    %173 = vmatpush.bf16.msra.mxu0 0
    %174 = vmatpush.bf16.msra.mxu0 0
    %175 = vmatpush.bf16.msra.mxu0 0
    %176 = vmatpush.bf16.msra.mxu0 0
    %177 = vmatpush.bf16.msra.mxu0 0
    %178 = vmatpush.bf16.msra.mxu0 0
    %179 = vmatpush.bf16.msra.mxu0 %v151
    %180 = vmatpush.bf16.msra.mxu0 %v150
    %181 = vmatmul.bf16.gmra.mxu0 %v171
    %v182 = vpop.f32.mrf.mxu0
    %v183 = vadd.f32 %v157, %v182
    %v184 = vpop.f32.mrf.mxu0
    %v185 = vadd.f32 %v162, %v184
    %186 = vdwg.mxu0
    %v187 = vmax.f32 %v183, 0.0
    %v188 = vmax.f32 %v185, 0.0
    %v189 = vld [vmem:[%s7] sm:$0x3]
    %v190 = vpack.c.bf16 %v188, %v187
    %v191 = vld [vmem:[%s8] sm:$0x7]
    %193 = vset.pattern.permute.xlu0 0
    %194 = vperm.xlu0 %193, %v191
    %v195 = vpop.permute.xlu0 %194
    %v198 = vsel %vm118, %v189, 0
    %200 = vmatpush.bf16.msra.mxu0 0
    %201 = vmatpush.bf16.msra.mxu0 0
    %202 = vmatpush.bf16.msra.mxu0 0
    %203 = vmatpush.bf16.msra.mxu0 0
    %204 = vmatpush.bf16.msra.mxu0 0
    %205 = vmatpush.bf16.msra.mxu0 0
    %206 = vmatpush.bf16.msra.mxu0 0
    %207 = vmatpush.bf16.msra.mxu0 %v190
    %208 = vmatmul.bf16.gmra.mxu0 %v198
    %v209 = vpop.f32.mrf.mxu0
    %v210 = vadd.f32 %v195, %v209
    %v211 = vpop.f32.mrf.mxu0
    %212 = vdwg.mxu0
    %213 = vst [vmem:[#allocation2] sm:$0x7] %v210
    // Predicated region
    $region38: #{tpu_custom_call.1} parent=1 // pred_check
      _
    $region39: #{tpu_custom_call.1} parent=1 // pred_check_branch
      %215 = sbr.rel (0) target = $region41
    $region40: #{tpu_custom_call.1} parent=1 // pred_region
      %217 = vsyncadd [#allocation3], 0
      %s219 = sshll.u32 [#allocation2], 4
      %s220 = int_to_ptr.vmem [resolvable:$true] %s219
      %s221 = sshll.u32 %s9, 4
      %s222 = int_to_ptr.hbm [resolvable:$true] %s221
      %224 = dma.vmem_to_hbm [thread:$0]  %s220, 64, %s222, [#allocation3]
    $region41: #{tpu_custom_call.1} parent=1 // pred_fallthru
      _
    // Predicated region
    $region42: #{tpu_custom_call.1} parent=1 // pred_check
      _
    $region43: #{tpu_custom_call.1} parent=1 // pred_check_branch
      %226 = sbr.rel (0) target = $region45
    $region44: #{tpu_custom_call.1} parent=1 // pred_region
      %228 = dma.done [#allocation3], 64
    $region45: #{tpu_custom_call.1} parent=1 // pred_fallthru
      _
    %229 = vsyncpa [#allocation3], 1

</llo_original>
